<compile_context>
chip_gen: v5e
topology: v5e:2x2
jax: 0.10.0
libtpu: 0.0.40
codegen_flags: <defaults>
</compile_context>

<pallas_src>
import jax
import jax.numpy as jnp
import numpy as np
from jax.experimental import pallas as pl
from jax.experimental.pallas import tpu as pltpu


def _round_up(x, m):
    return ((x + m - 1) // m) * m


# ----------------------------------------------------------------------------
# Kernel: whole 3-layer MLP for one batch tile, batch on the lane axis.
# ----------------------------------------------------------------------------
def _q_critic_kernel(sa_ref, w1t_ref, b1_ref, w2t_ref, b2_ref,
                     w3_ref, b3_ref, q_ref):
    # layer 1: (H1, K) @ (K, TILE_B) -> (H1, TILE_B); bf16 operands, f32 acc
    h1 = jnp.dot(w1t_ref[...], sa_ref[...],
                 preferred_element_type=jnp.float32)
    h1 = jnp.maximum(h1 + b1_ref[...], 0.0)                   # (H1, TB) f32

    # layer 2: (H2, H1) @ (H1, TILE_B) -> (H2, TILE_B); bf16 operands, f32 acc
    h2 = jnp.dot(w2t_ref[...], h1.astype(jnp.bfloat16),
                 preferred_element_type=jnp.float32)
    h2 = jnp.maximum(h2 + b2_ref[...], 0.0)                   # (H2, TB) f32

    # layer 3: W3 is a single column -> VPU broadcast-multiply + sublane
    # reduction (kept in f32) instead of an MXU matmul against a zero-padded
    # (H2, 128) weight tile.  Result is a lane-dense (1, TILE_B) row.
    q = jnp.sum(h2 * w3_ref[...], axis=0, keepdims=True)      # (1, TB) f32
    q_ref[...] = q + b3_ref[...]


# ----------------------------------------------------------------------------
# Wrapper: batch-tiled grid along the lane axis, weights resident in VMEM.
# ----------------------------------------------------------------------------
def q_critic_forward(state, action, kparams):
    B = state.shape[0]
    H1, K = kparams["w1t"].shape          # (padded net_width, state+action dim)
    H2 = kparams["w2t"].shape[0]          # padded 300 -> 384

    # Batch lives on the lane axis -> pad batch to a multiple of 128.
    B128 = _round_up(max(B, 1), 128)
    if B128 <= 256:
        tile_b = B128                     # single small tile
    else:
        # >= 2 grid steps (both v7x TensorCores busy under "parallel"),
        # capped at 2048 so double-buffered tiles + f32 intermediates stay
        # inside v5e's 16 MiB / v7x's 32 MiB scoped-VMEM defaults.
        tile_b = min(2048, _round_up(B128 // 2, 128))
    B_pad = _round_up(B128, tile_b)

    # Fused concat + transpose + bf16 cast: one tiny (B,16)-sized XLA op; the
    # kernel then does layer 1 as a single K=16 matmul with bf16 operands.
    sa_t = jnp.concatenate([state.T, action.T], axis=0).astype(jnp.bfloat16)
    sa_t = jnp.pad(sa_t, ((0, 0), (0, B_pad - B)))            # (K, B_pad)

    grid = (B_pad // tile_b,)
    resident = lambda i: (0, 0)           # weights/biases stay in VMEM

    out = pl.pallas_call(
        _q_critic_kernel,
        out_shape=jax.ShapeDtypeStruct((1, B_pad), jnp.float32),
        grid_spec=pltpu.PrefetchScalarGridSpec(
            num_scalar_prefetch=0,
            grid=grid,
            in_specs=[
                pl.BlockSpec((K, tile_b), lambda i: (0, i)),   # sa^T tile (bf16)
                pl.BlockSpec((H1, K), resident),               # W1^T (bf16)
                pl.BlockSpec((H1, 1), resident),               # b1   (f32)
                pl.BlockSpec((H2, H1), resident),              # W2^T (bf16)
                pl.BlockSpec((H2, 1), resident),               # b2   (f32)
                pl.BlockSpec((H2, 1), resident),               # w3   (f32)
                pl.BlockSpec((1, 1), resident),                # b3   (f32)
            ],
            out_specs=pl.BlockSpec((1, tile_b), lambda i: (0, i)),
        ),
        compiler_params=pltpu.CompilerParams(
            dimension_semantics=("parallel",)),
    )(sa_t, kparams["w1t"], kparams["b1"], kparams["w2t"], kparams["b2"],
      kparams["w3"], kparams["b3"])

    return out[0, :B].reshape(B, 1)


# ----------------------------------------------------------------------------
# Parameter init (PyTorch nn.Linear style) + one-time packing for the kernel.
# ----------------------------------------------------------------------------
def init_params(key, state_dim, action_dim, net_width):
    def linear(k, fan_in, fan_out):
        kw, kb = jax.random.split(k)
        bound = 1.0 / np.sqrt(fan_in)
        w = jax.random.uniform(kw, (fan_in, fan_out), jnp.float32,
                               minval=-bound, maxval=bound)
        b = jax.random.uniform(kb, (1, fan_out), jnp.float32,
                               minval=-bound, maxval=bound)
        return w, b

    k1, k2, k3 = jax.random.split(key, 3)
    w1, b1 = linear(k1, state_dim + action_dim, net_width)
    w2, b2 = linear(k2, net_width, 300)
    w3, b3 = linear(k3, 300, 1)
    return {"w1": w1, "b1": b1, "w2": w2, "b2": b2, "w3": w3, "b3": b3}


def pack_params(params):
    """Transpose weights for the batch-on-lanes dataflow, zero-pad hidden dims
    to multiples of 128, and cast the MXU operands (W1, W2) to bf16."""
    def pad_to(x, rows, cols):
        return jnp.pad(x, ((0, rows - x.shape[0]), (0, cols - x.shape[1])))

    w1, b1 = params["w1"], params["b1"]          # (K, nw), (1, nw)
    w2, b2 = params["w2"], params["b2"]          # (nw, 300), (1, 300)
    w3, b3 = params["w3"], params["b3"]          # (300, 1), (1, 1)

    K = w1.shape[0]
    H1 = _round_up(w1.shape[1], 128)             # net_width -> 128
    H2 = _round_up(w2.shape[1], 128)             # 300 -> 384

    return {
        "w1t": pad_to(w1, K, H1).T.astype(jnp.bfloat16),    # (H1, K)
        "b1":  pad_to(b1, 1, H1).T,                         # (H1, 1) f32
        "w2t": pad_to(w2, H1, H2).T.astype(jnp.bfloat16),   # (H2, H1)
        "b2":  pad_to(b2, 1, H2).T,                         # (H2, 1) f32
        "w3":  pad_to(w3, H2, 1),                           # (H2, 1) f32 (VPU)
        "b3":  b3,                                          # (1, 1)  f32
    }
    # TODO(synk): optional fp8 W2 path for v7x if still MXU-bound after bf16.


# Pure-JAX reference (mirrors the PyTorch forward, all f32).
def q_critic_ref(state, action, p):
    sa = jnp.concatenate([state, action], axis=1)
    q = jnp.maximum(sa @ p["w1"] + p["b1"], 0.0)
    q = jnp.maximum(q @ p["w2"] + p["b2"], 0.0)
    return q @ p["w3"] + p["b3"]


if __name__ == "__main__":
    batch, state_dim, action_dim, net_width = 8, 12, 4, 32

    key = jax.random.PRNGKey(0)
    k_state, k_action, k_params = jax.random.split(key, 3)

    state = jax.random.normal(k_state, (batch, state_dim), jnp.float32)
    action = jax.random.normal(k_action, (batch, action_dim), jnp.float32)
    params = init_params(k_params, state_dim, action_dim, net_width)
    kparams = pack_params(params)              # one-time packing / padding

    q = q_critic_forward(state, action, kparams)
    jax.block_until_ready(q)

    q_ref = q_critic_ref(state, action, params)
    # bf16 MXU operands (f32 accumulation, f32 layer 3) -> looser tolerance
    # than the pure-f32 version.
    np.testing.assert_allclose(np.asarray(q), np.asarray(q_ref),
                               rtol=5e-2, atol=5e-2)
    assert q.shape == (batch, 1)

    print("KERNEL_OK")
</pallas_src>

<mosaic_0001>
module attributes {stable_mosaic.version = 11 : i64} {
  func.func @_q_critic_kernel(%arg0: i32, %arg1: memref<16x128xbf16, #tpu.memory_space<vmem>>, %arg2: memref<128x16xbf16, #tpu.memory_space<vmem>>, %arg3: memref<128x1xf32, #tpu.memory_space<vmem>>, %arg4: memref<384x128xbf16, #tpu.memory_space<vmem>>, %arg5: memref<384x1xf32, #tpu.memory_space<vmem>>, %arg6: memref<384x1xf32, #tpu.memory_space<vmem>>, %arg7: memref<1x1xf32, #tpu.memory_space<vmem>>, %arg8: memref<1x128xf32, #tpu.memory_space<vmem>>) attributes {dimension_semantics = [#tpu.dimension_semantics<parallel>], iteration_bounds = array<i64: 1>, scalar_prefetch = 0 : i64, scratch_operands = 0 : i64, tpu.core_type = #tpu.core_type<tc>, window_params = [{transform_indices = @transform_0, window_bounds = array<i64: 16, 128>}, {pipeline_mode = #tpu.pipeline_mode<synchronous>, transform_indices = @transform_1, window_bounds = array<i64: 128, 16>}, {pipeline_mode = #tpu.pipeline_mode<synchronous>, transform_indices = @transform_2, window_bounds = array<i64: 128, 1>}, {pipeline_mode = #tpu.pipeline_mode<synchronous>, transform_indices = @transform_3, window_bounds = array<i64: 384, 128>}, {pipeline_mode = #tpu.pipeline_mode<synchronous>, transform_indices = @transform_4, window_bounds = array<i64: 384, 1>}, {pipeline_mode = #tpu.pipeline_mode<synchronous>, transform_indices = @transform_5, window_bounds = array<i64: 384, 1>}, {pipeline_mode = #tpu.pipeline_mode<synchronous>, transform_indices = @transform_6, window_bounds = array<i64: 1, 1>}, {transform_indices = @transform_7, window_bounds = array<i64: 1, 128>}]} {
    %c0 = arith.constant 0 : index
    %c0_0 = arith.constant 0 : index
    %0 = vector.load %arg2[%c0, %c0_0] : memref<128x16xbf16, #tpu.memory_space<vmem>>, vector<128x16xbf16>
    %c0_1 = arith.constant 0 : index
    %c0_2 = arith.constant 0 : index
    %1 = vector.load %arg1[%c0_1, %c0_2] : memref<16x128xbf16, #tpu.memory_space<vmem>>, vector<16x128xbf16>
    %cst = arith.constant dense<0.000000e+00> : vector<128x128xf32>
    %2 = tpu.matmul %0, %1, %cst {dimension_numbers = #tpu.dot_dimension_numbers<[1], [0], [0], [1], [0, 0, 1, 1], [], []>} : vector<128x16xbf16>, vector<16x128xbf16>, vector<128x128xf32> -> vector<128x128xf32>
    %c0_3 = arith.constant 0 : index
    %c0_4 = arith.constant 0 : index
    %3 = vector.load %arg3[%c0_3, %c0_4] : memref<128x1xf32, #tpu.memory_space<vmem>>, vector<128x1xf32>
    %4 = vector.broadcast %3 : vector<128x1xf32> to vector<128x128xf32>
    %5 = arith.addf %2, %4 : vector<128x128xf32>
    %cst_5 = arith.constant 0.000000e+00 : f32
    %6 = vector.broadcast %cst_5 : f32 to vector<128x128xf32>
    %7 = arith.maximumf %5, %6 : vector<128x128xf32>
    %c0_6 = arith.constant 0 : index
    %c0_7 = arith.constant 0 : index
    %8 = vector.load %arg4[%c0_6, %c0_7] : memref<384x128xbf16, #tpu.memory_space<vmem>>, vector<384x128xbf16>
    %9 = arith.truncf %7 : vector<128x128xf32> to vector<128x128xbf16>
    %cst_8 = arith.constant dense<0.000000e+00> : vector<384x128xf32>
    %10 = tpu.matmul %8, %9, %cst_8 {dimension_numbers = #tpu.dot_dimension_numbers<[1], [0], [0], [1], [0, 0, 1, 1], [], []>} : vector<384x128xbf16>, vector<128x128xbf16>, vector<384x128xf32> -> vector<384x128xf32>
    %c0_9 = arith.constant 0 : index
    %c0_10 = arith.constant 0 : index
    %11 = vector.load %arg5[%c0_9, %c0_10] : memref<384x1xf32, #tpu.memory_space<vmem>>, vector<384x1xf32>
    %12 = vector.broadcast %11 : vector<384x1xf32> to vector<384x128xf32>
    %13 = arith.addf %10, %12 : vector<384x128xf32>
    %cst_11 = arith.constant 0.000000e+00 : f32
    %14 = vector.broadcast %cst_11 : f32 to vector<384x128xf32>
    %15 = arith.maximumf %13, %14 : vector<384x128xf32>
    %c0_12 = arith.constant 0 : index
    %c0_13 = arith.constant 0 : index
    %16 = vector.load %arg6[%c0_12, %c0_13] : memref<384x1xf32, #tpu.memory_space<vmem>>, vector<384x1xf32>
    %17 = vector.broadcast %16 : vector<384x1xf32> to vector<384x128xf32>
    %18 = arith.mulf %15, %17 : vector<384x128xf32>
    %cst_14 = arith.constant dense<0.000000e+00> : vector<128xf32>
    %19 = vector.multi_reduction <add>, %18, %cst_14 [0] : vector<384x128xf32> to vector<128xf32>
    %20 = vector.shape_cast %19 : vector<128xf32> to vector<1x128xf32>
    %c0_15 = arith.constant 0 : index
    %c0_16 = arith.constant 0 : index
    %21 = vector.load %arg7[%c0_15, %c0_16] : memref<1x1xf32, #tpu.memory_space<vmem>>, vector<1x1xf32>
    %22 = vector.broadcast %21 : vector<1x1xf32> to vector<1x128xf32>
    %23 = arith.addf %20, %22 : vector<1x128xf32>
    %c0_17 = arith.constant 0 : index
    %c0_18 = arith.constant 0 : index
    %24 = vector.load %arg8[%c0_17, %c0_18] : memref<1x128xf32, #tpu.memory_space<vmem>>, vector<1x128xf32>
    tpu.vector_store %arg8[%c0_17, %c0_18], %23 {strides = array<i32>} : memref<1x128xf32, #tpu.memory_space<vmem>>, vector<1x128xf32>,
    return
  }
  func.func @transform_0(%arg0: i32) -> (i32, i32) {
    %c0_i32 = arith.constant 0 : i32
    %c0_i32_0 = arith.constant 0 : i32
    return %c0_i32, %arg0 : i32, i32
  }
  func.func @transform_1(%arg0: i32) -> (i32, i32) {
    %c0_i32 = arith.constant 0 : i32
    %c0_i32_0 = arith.constant 0 : i32
    %c0_i32_1 = arith.constant 0 : i32
    return %c0_i32, %c0_i32_0 : i32, i32
  }
  func.func @transform_2(%arg0: i32) -> (i32, i32) {
    %c0_i32 = arith.constant 0 : i32
    %c0_i32_0 = arith.constant 0 : i32
    %c0_i32_1 = arith.constant 0 : i32
    return %c0_i32, %c0_i32_0 : i32, i32
  }
  func.func @transform_3(%arg0: i32) -> (i32, i32) {
    %c0_i32 = arith.constant 0 : i32
    %c0_i32_0 = arith.constant 0 : i32
    %c0_i32_1 = arith.constant 0 : i32
    return %c0_i32, %c0_i32_0 : i32, i32
  }
  func.func @transform_4(%arg0: i32) -> (i32, i32) {
    %c0_i32 = arith.constant 0 : i32
    %c0_i32_0 = arith.constant 0 : i32
    %c0_i32_1 = arith.constant 0 : i32
    return %c0_i32, %c0_i32_0 : i32, i32
  }
  func.func @transform_5(%arg0: i32) -> (i32, i32) {
    %c0_i32 = arith.constant 0 : i32
    %c0_i32_0 = arith.constant 0 : i32
    %c0_i32_1 = arith.constant 0 : i32
    return %c0_i32, %c0_i32_0 : i32, i32
  }
  func.func @transform_6(%arg0: i32) -> (i32, i32) {
    %c0_i32 = arith.constant 0 : i32
    %c0_i32_0 = arith.constant 0 : i32
    %c0_i32_1 = arith.constant 0 : i32
    return %c0_i32, %c0_i32_0 : i32, i32
  }
  func.func @transform_7(%arg0: i32) -> (i32, i32) {
    %c0_i32 = arith.constant 0 : i32
    %c0_i32_0 = arith.constant 0 : i32
    return %c0_i32, %arg0 : i32, i32
  }
}

</mosaic_0001>

<llo_original>
// kernel: tpu_custom_call.1
$region0: #{tpu_custom_call.1}
  #allocation0 [shape = 'u32[]', space=smem, size = 0x4, offset = 0x4, fixed_abs, tag = 'smem constant byte address 0x4 - core index']
  #allocation1 [shape = 'u32[72,128]{1,0:T(1,128)}', space=vmem, size = 0x9000, scoped, tag = 'internal scratch']
  #allocation2 [shape = 'f32[1,1]{1,0:T(1,128)S(1)}', space=vmem, size = 0x200, scoped, tag = 'scoped memory for tpu_custom_call.1']
  %s0 = inlined_call_operand.vmem [shape: bf16[16,128], index: 0, kind: input, shape index: {}]
  %s1 = inlined_call_operand.vmem [shape: bf16[128,16], index: 1, kind: input, shape index: {}]
  %s2 = inlined_call_operand.vmem [shape: f32[128,1], index: 2, kind: input, shape index: {}]
  %s3 = inlined_call_operand.vmem [shape: bf16[384,128], index: 3, kind: input, shape index: {}]
  %s4 = inlined_call_operand.vmem [shape: f32[384,1], index: 4, kind: input, shape index: {}]
  %s5 = inlined_call_operand.vmem [shape: f32[384,1], index: 5, kind: input, shape index: {}]
  %s6 = inlined_call_operand.<no memory space> [shape: f32[1,1], index: 6, kind: input, shape index: {}]
  %s7 = inlined_call_operand.hbm [shape: f32[1,128], index: 7, kind: output, shape index: {}]
  %s8 = sld [smem:[#allocation0]]
  $region38: #{tpu_custom_call.1} parent=0
    _
  %s10 = ssub.s32 1, %s8
  %s11 = scalar_select 0, %s10, %s8
  %v12 = vstv %s6
  %13 = vst [vmem:[#allocation2] sm:$0x1] %v12
  $region1: #{tpu_custom_call.1} parent=0
    #allocation3 [shape = 'u8[512]{0}', space=vmem, size = 0x400, scoped, tag = 'output window, operand 0, single buffered']
    #allocation4 [shape = 's32[1]{0}', space=sflag, size = 0x4, scoped, tag = 'scoped memory for tpu_custom_call.1']
    %14 = vsyncpa [#allocation4], 0
    // Predicated region
    $region2: #{tpu_custom_call.1} parent=1 // pred_check
      _
    $region3: #{tpu_custom_call.1} parent=1 // pred_check_branch
      %16 = sbr.rel (0) target = $region5
    $region4: #{tpu_custom_call.1} parent=1 // pred_region
      _
    $region5: #{tpu_custom_call.1} parent=1 // pred_fallthru
      _
    // Predicated region
    $region6: #{tpu_custom_call.1} parent=1 // pred_check
      _
    $region7: #{tpu_custom_call.1} parent=1 // pred_check_branch
      %18 = sbr.rel (0) target = $region9
    $region8: #{tpu_custom_call.1} parent=1 // pred_region
      _
    $region9: #{tpu_custom_call.1} parent=1 // pred_fallthru
      _
    // Predicated region
    $region10: #{tpu_custom_call.1} parent=1 // pred_check
      _
    $region11: #{tpu_custom_call.1} parent=1 // pred_check_branch
      %20 = sbr.rel (0) target = $region13
    $region12: #{tpu_custom_call.1} parent=1 // pred_region
      _
    $region13: #{tpu_custom_call.1} parent=1 // pred_fallthru
      _
    // Predicated region
    $region14: #{tpu_custom_call.1} parent=1 // pred_check
      _
    $region15: #{tpu_custom_call.1} parent=1 // pred_check_branch
      %22 = sbr.rel (0) target = $region17
    $region16: #{tpu_custom_call.1} parent=1 // pred_region
      _
    $region17: #{tpu_custom_call.1} parent=1 // pred_fallthru
      _
    // Predicated region
    $region18: #{tpu_custom_call.1} parent=1 // pred_check
      _
    $region19: #{tpu_custom_call.1} parent=1 // pred_check_branch
      %24 = sbr.rel (0) target = $region21
    $region20: #{tpu_custom_call.1} parent=1 // pred_region
      _
    $region21: #{tpu_custom_call.1} parent=1 // pred_fallthru
      _
    // Predicated region
    $region22: #{tpu_custom_call.1} parent=1 // pred_check
      _
    $region23: #{tpu_custom_call.1} parent=1 // pred_check_branch
      %26 = sbr.rel (0) target = $region25
    $region24: #{tpu_custom_call.1} parent=1 // pred_region
      _
    $region25: #{tpu_custom_call.1} parent=1 // pred_fallthru
      _
    // Predicated region
    $region26: #{tpu_custom_call.1} parent=1 // pred_check
      _
    $region27: #{tpu_custom_call.1} parent=1 // pred_check_branch
      %28 = sbr.rel (0) target = $region29
    $region28: #{tpu_custom_call.1} parent=1 // pred_region
      _
    $region29: #{tpu_custom_call.1} parent=1 // pred_fallthru
      _
    %v30 = vld [vmem:[%s1] sm:$0xf]
    %v31 = vld [vmem:[%s1 + $0x4] sm:$0xf]
    %v32 = vld [vmem:[%s1 + $0x8] sm:$0xf]
    %v33 = vld [vmem:[%s1 + $0xc] sm:$0xf]
    %v34 = vld [vmem:[%s1 + $0x10] sm:$0xf]
    %v35 = vld [vmem:[%s1 + $0x14] sm:$0xf]
    %v36 = vld [vmem:[%s1 + $0x18] sm:$0xf]
    %v37 = vld [vmem:[%s1 + $0x1c] sm:$0xf]
    %v38 = vld [vmem:[%s1 + $0x20] sm:$0xf]
    %v39 = vld [vmem:[%s1 + $0x24] sm:$0xf]
    %v40 = vld [vmem:[%s1 + $0x28] sm:$0xf]
    %v41 = vld [vmem:[%s1 + $0x2c] sm:$0xf]
    %v42 = vld [vmem:[%s1 + $0x30] sm:$0xf]
    %v43 = vld [vmem:[%s1 + $0x34] sm:$0xf]
    %v44 = vld [vmem:[%s1 + $0x38] sm:$0xf]
    %v45 = vld [vmem:[%s1 + $0x3c] sm:$0xf]
    %v46 = vld [vmem:[%s0] sm:$0xf]
    %v47 = vld [vmem:[%s0 + $0x4] sm:$0xf]
    %v48 = vld [vmem:[%s2] sm:$0xff]
    %v49 = vld [vmem:[%s2 + $0x8] sm:$0xff]
    %v50 = vld [vmem:[%s2 + $0x10] sm:$0xff]
    %v51 = vld [vmem:[%s2 + $0x18] sm:$0xff]
    %v52 = vld [vmem:[%s2 + $0x20] sm:$0xff]
    %v53 = vld [vmem:[%s2 + $0x28] sm:$0xff]
    %v54 = vld [vmem:[%s2 + $0x30] sm:$0xff]
    %v55 = vld [vmem:[%s2 + $0x38] sm:$0xff]
    %v56 = vld [vmem:[%s2 + $0x40] sm:$0xff]
    %v57 = vld [vmem:[%s2 + $0x48] sm:$0xff]
    %v58 = vld [vmem:[%s2 + $0x50] sm:$0xff]
    %v59 = vld [vmem:[%s2 + $0x58] sm:$0xff]
    %v60 = vld [vmem:[%s2 + $0x60] sm:$0xff]
    %v61 = vld [vmem:[%s2 + $0x68] sm:$0xff]
    %v62 = vld [vmem:[%s2 + $0x70] sm:$0xff]
    %v63 = vld [vmem:[%s2 + $0x78] sm:$0xff]
    %65 = vset.pattern.permute.xlu0 0
    %66 = vperm.xlu0 %65, %v48
    %v67 = vpop.permute.xlu0 %66
    %70 = vset.pattern.permute.xlu0 0
    %71 = vperm.xlu0 %70, %v49
    %v72 = vpop.permute.xlu0 %71
    %75 = vset.pattern.permute.xlu0 0
    %76 = vperm.xlu0 %75, %v50
    %v77 = vpop.permute.xlu0 %76
    %80 = vset.pattern.permute.xlu0 0
    %81 = vperm.xlu0 %80, %v51
    %v82 = vpop.permute.xlu0 %81
    %85 = vset.pattern.permute.xlu0 0
    %86 = vperm.xlu0 %85, %v52
    %v87 = vpop.permute.xlu0 %86
    %90 = vset.pattern.permute.xlu0 0
    %91 = vperm.xlu0 %90, %v53
    %v92 = vpop.permute.xlu0 %91
    %95 = vset.pattern.permute.xlu0 0
    %96 = vperm.xlu0 %95, %v54
    %v97 = vpop.permute.xlu0 %96
    %100 = vset.pattern.permute.xlu0 0
    %101 = vperm.xlu0 %100, %v55
    %v102 = vpop.permute.xlu0 %101
    %105 = vset.pattern.permute.xlu0 0
    %106 = vperm.xlu0 %105, %v56
    %v107 = vpop.permute.xlu0 %106
    %110 = vset.pattern.permute.xlu0 0
    %111 = vperm.xlu0 %110, %v57
    %v112 = vpop.permute.xlu0 %111
    %115 = vset.pattern.permute.xlu0 0
    %116 = vperm.xlu0 %115, %v58
    %v117 = vpop.permute.xlu0 %116
    %120 = vset.pattern.permute.xlu0 0
    %121 = vperm.xlu0 %120, %v59
    %v122 = vpop.permute.xlu0 %121
    %125 = vset.pattern.permute.xlu0 0
    %126 = vperm.xlu0 %125, %v60
    %v127 = vpop.permute.xlu0 %126
    %130 = vset.pattern.permute.xlu0 0
    %131 = vperm.xlu0 %130, %v61
    %v132 = vpop.permute.xlu0 %131
    %135 = vset.pattern.permute.xlu0 0
    %136 = vperm.xlu0 %135, %v62
    %v137 = vpop.permute.xlu0 %136
    %140 = vset.pattern.permute.xlu0 0
    %141 = vperm.xlu0 %140, %v63
    %v142 = vpop.permute.xlu0 %141
    %v160 = vunpack.c.l.b16 %v30
    %v161 = vunpack.c.l.b16 %v31
    %v162 = vunpack.c.l.b16 %v32
    %v163 = vunpack.c.l.b16 %v33
    %v164 = vunpack.c.l.b16 %v34
    %v165 = vunpack.c.l.b16 %v35
    %v166 = vunpack.c.l.b16 %v36
    %v167 = vunpack.c.l.b16 %v37
    %v168 = vunpack.c.l.b16 %v38
    %v169 = vunpack.c.l.b16 %v39
    %v170 = vunpack.c.l.b16 %v40
    %v171 = vunpack.c.l.b16 %v41
    %v172 = vunpack.c.l.b16 %v42
    %v173 = vunpack.c.l.b16 %v43
    %v174 = vunpack.c.l.b16 %v44
    %v175 = vunpack.c.l.b16 %v45
    %v176 = vpack.c.b16 %v161, %v160
    %v177 = vpack.c.b16 %v163, %v162
    %v178 = vpack.c.b16 %v165, %v164
    %v179 = vpack.c.b16 %v167, %v166
    %v180 = vpack.c.b16 %v169, %v168
    %v181 = vpack.c.b16 %v171, %v170
    %v182 = vpack.c.b16 %v173, %v172
    %v183 = vpack.c.b16 %v175, %v174
    %v186 = vunpack.c.l.b16 %v46
    %v187 = vunpack.c.l.b16 %v47
    %v188 = vpack.c.b16 %v187, %v186
    %vm190 = vcmask 130048
    %v192 = vsel %vm190, %v176, 0
    %v195 = vsel %vm190, %v177, 0
    %v198 = vsel %vm190, %v178, 0
    %v201 = vsel %vm190, %v179, 0
    %v204 = vsel %vm190, %v180, 0
    %v207 = vsel %vm190, %v181, 0
    %v210 = vsel %vm190, %v182, 0
    %v213 = vsel %vm190, %v183, 0
    %215 = vmatpush.bf16.msra.mxu0 0
    %216 = vmatpush.bf16.msra.mxu0 0
    %217 = vmatpush.bf16.msra.mxu0 0
    %218 = vmatpush.bf16.msra.mxu0 0
    %219 = vmatpush.bf16.msra.mxu0 0
    %220 = vmatpush.bf16.msra.mxu0 0
    %221 = vmatpush.bf16.msra.mxu0 0
    %222 = vmatpush.bf16.msra.mxu0 %v188
    %223 = vmatmul.bf16.gmra.mxu0 %v192
    %v224 = vpop.f32.mrf.mxu0
    %v225 = vadd.f32 %v67, %v224
    %v226 = vpop.f32.mrf.mxu0
    %v227 = vadd.f32 %v72, %v226
    %228 = vmatmul.bf16.gmra.mxu0 %v195
    %v229 = vpop.f32.mrf.mxu0
    %v230 = vadd.f32 %v77, %v229
    %v231 = vpop.f32.mrf.mxu0
    %v232 = vadd.f32 %v82, %v231
    %233 = vmatmul.bf16.gmra.mxu0 %v198
    %v234 = vpop.f32.mrf.mxu0
    %v235 = vadd.f32 %v87, %v234
    %v236 = vpop.f32.mrf.mxu0
    %v237 = vadd.f32 %v92, %v236
    %238 = vmatmul.bf16.gmra.mxu0 %v201
    %v239 = vpop.f32.mrf.mxu0
    %v240 = vadd.f32 %v97, %v239
    %v241 = vpop.f32.mrf.mxu0
    %v242 = vadd.f32 %v102, %v241
    %243 = vmatmul.bf16.gmra.mxu0 %v204
    %v244 = vpop.f32.mrf.mxu0
    %v245 = vadd.f32 %v107, %v244
    %v246 = vpop.f32.mrf.mxu0
    %v247 = vadd.f32 %v112, %v246
    %248 = vmatmul.bf16.gmra.mxu0 %v207
    %v249 = vpop.f32.mrf.mxu0
    %v250 = vadd.f32 %v117, %v249
    %v251 = vpop.f32.mrf.mxu0
    %v252 = vadd.f32 %v122, %v251
    %253 = vmatmul.bf16.gmra.mxu0 %v210
    %v254 = vpop.f32.mrf.mxu0
    %v255 = vadd.f32 %v127, %v254
    %v256 = vpop.f32.mrf.mxu0
    %v257 = vadd.f32 %v132, %v256
    %258 = vmatmul.bf16.gmra.mxu0 %v213
    %v259 = vpop.f32.mrf.mxu0
    %v260 = vadd.f32 %v137, %v259
    %v261 = vpop.f32.mrf.mxu0
    %v262 = vadd.f32 %v142, %v261
    %263 = vdwg.mxu0
    %v264 = vmax.f32 %v225, 0.0
    %v265 = vmax.f32 %v227, 0.0
    %v266 = vmax.f32 %v230, 0.0
    %v267 = vmax.f32 %v232, 0.0
    %v268 = vmax.f32 %v235, 0.0
    %v269 = vmax.f32 %v237, 0.0
    %v270 = vmax.f32 %v240, 0.0
    %v271 = vmax.f32 %v242, 0.0
    %v272 = vmax.f32 %v245, 0.0
    %v273 = vmax.f32 %v247, 0.0
    %v274 = vmax.f32 %v250, 0.0
    %v275 = vmax.f32 %v252, 0.0
    %v276 = vmax.f32 %v255, 0.0
    %v277 = vmax.f32 %v257, 0.0
    %v278 = vmax.f32 %v260, 0.0
    %v279 = vmax.f32 %v262, 0.0
    %v280 = vld [vmem:[%s3] sm:$0xf]
    %v281 = vld [vmem:[%s3 + $0x4] sm:$0xf]
    %v282 = vld [vmem:[%s3 + $0x8] sm:$0xf]
    %v283 = vld [vmem:[%s3 + $0xc] sm:$0xf]
    %v284 = vld [vmem:[%s3 + $0x10] sm:$0xf]
    %v285 = vld [vmem:[%s3 + $0x14] sm:$0xf]
    %v286 = vld [vmem:[%s3 + $0x18] sm:$0xf]
    %v287 = vld [vmem:[%s3 + $0x1c] sm:$0xf]
    %v288 = vld [vmem:[%s3 + $0x20] sm:$0xf]
    %v289 = vld [vmem:[%s3 + $0x24] sm:$0xf]
    %v290 = vld [vmem:[%s3 + $0x28] sm:$0xf]
    %v291 = vld [vmem:[%s3 + $0x2c] sm:$0xf]
    %v292 = vld [vmem:[%s3 + $0x30] sm:$0xf]
    %v293 = vld [vmem:[%s3 + $0x34] sm:$0xf]
    %v294 = vld [vmem:[%s3 + $0x38] sm:$0xf]
    %v295 = vld [vmem:[%s3 + $0x3c] sm:$0xf]
    %v296 = vld [vmem:[%s3 + $0x40] sm:$0xf]
    %v297 = vld [vmem:[%s3 + $0x44] sm:$0xf]
    %v298 = vld [vmem:[%s3 + $0x48] sm:$0xf]
    %v299 = vld [vmem:[%s3 + $0x4c] sm:$0xf]
    %v300 = vld [vmem:[%s3 + $0x50] sm:$0xf]
    %v301 = vld [vmem:[%s3 + $0x54] sm:$0xf]
    %v302 = vld [vmem:[%s3 + $0x58] sm:$0xf]
    %v303 = vld [vmem:[%s3 + $0x5c] sm:$0xf]
    %v304 = vld [vmem:[%s3 + $0x60] sm:$0xf]
    %v305 = vld [vmem:[%s3 + $0x64] sm:$0xf]
    %v306 = vld [vmem:[%s3 + $0x68] sm:$0xf]
    %v307 = vld [vmem:[%s3 + $0x6c] sm:$0xf]
    %v308 = vld [vmem:[%s3 + $0x70] sm:$0xf]
    %v309 = vld [vmem:[%s3 + $0x74] sm:$0xf]
    %v310 = vld [vmem:[%s3 + $0x78] sm:$0xf]
    %v311 = vld [vmem:[%s3 + $0x7c] sm:$0xf]
    %v312 = vld [vmem:[%s3 + $0x80] sm:$0xf]
    %v313 = vld [vmem:[%s3 + $0x84] sm:$0xf]
    %v314 = vld [vmem:[%s3 + $0x88] sm:$0xf]
    %v315 = vld [vmem:[%s3 + $0x8c] sm:$0xf]
    %v316 = vld [vmem:[%s3 + $0x90] sm:$0xf]
    %v317 = vld [vmem:[%s3 + $0x94] sm:$0xf]
    %v318 = vld [vmem:[%s3 + $0x98] sm:$0xf]
    %v319 = vld [vmem:[%s3 + $0x9c] sm:$0xf]
    %v320 = vld [vmem:[%s3 + $0xa0] sm:$0xf]
    %v321 = vld [vmem:[%s3 + $0xa4] sm:$0xf]
    %v322 = vld [vmem:[%s3 + $0xa8] sm:$0xf]
    %v323 = vld [vmem:[%s3 + $0xac] sm:$0xf]
    %v324 = vld [vmem:[%s3 + $0xb0] sm:$0xf]
    %v325 = vld [vmem:[%s3 + $0xb4] sm:$0xf]
    %v326 = vld [vmem:[%s3 + $0xb8] sm:$0xf]
    %v327 = vld [vmem:[%s3 + $0xbc] sm:$0xf]
    %v328 = vpack.c.bf16 %v265, %v264
    %v329 = vpack.c.bf16 %v267, %v266
    %v330 = vpack.c.bf16 %v269, %v268
    %v331 = vpack.c.bf16 %v271, %v270
    %v332 = vpack.c.bf16 %v273, %v272
    %v333 = vpack.c.bf16 %v275, %v274
    %v334 = vpack.c.bf16 %v277, %v276
    %v335 = vpack.c.bf16 %v279, %v278
    %v336 = vld [vmem:[%s4] sm:$0xff]
    %v337 = vld [vmem:[%s4 + $0x8] sm:$0xff]
    %v338 = vld [vmem:[%s4 + $0x10] sm:$0xff]
    %v339 = vld [vmem:[%s4 + $0x18] sm:$0xff]
    %v340 = vld [vmem:[%s4 + $0x20] sm:$0xff]
    %v341 = vld [vmem:[%s4 + $0x28] sm:$0xff]
    %v342 = vld [vmem:[%s4 + $0x30] sm:$0xff]
    %v343 = vld [vmem:[%s4 + $0x38] sm:$0xff]
    %v344 = vld [vmem:[%s4 + $0x40] sm:$0xff]
    %v345 = vld [vmem:[%s4 + $0x48] sm:$0xff]
    %v346 = vld [vmem:[%s4 + $0x50] sm:$0xff]
    %v347 = vld [vmem:[%s4 + $0x58] sm:$0xff]
    %v348 = vld [vmem:[%s4 + $0x60] sm:$0xff]
    %v349 = vld [vmem:[%s4 + $0x68] sm:$0xff]
    %v350 = vld [vmem:[%s4 + $0x70] sm:$0xff]
    %v351 = vld [vmem:[%s4 + $0x78] sm:$0xff]
    %v352 = vld [vmem:[%s4 + $0x80] sm:$0xff]
    %v353 = vld [vmem:[%s4 + $0x88] sm:$0xff]
    %v354 = vld [vmem:[%s4 + $0x90] sm:$0xff]
    %v355 = vld [vmem:[%s4 + $0x98] sm:$0xff]
    %v356 = vld [vmem:[%s4 + $0xa0] sm:$0xff]
    %v357 = vld [vmem:[%s4 + $0xa8] sm:$0xff]
    %v358 = vld [vmem:[%s4 + $0xb0] sm:$0xff]
    %v359 = vld [vmem:[%s4 + $0xb8] sm:$0xff]
    %v360 = vld [vmem:[%s4 + $0xc0] sm:$0xff]
    %v361 = vld [vmem:[%s4 + $0xc8] sm:$0xff]
    %v362 = vld [vmem:[%s4 + $0xd0] sm:$0xff]
    %v363 = vld [vmem:[%s4 + $0xd8] sm:$0xff]
    %v364 = vld [vmem:[%s4 + $0xe0] sm:$0xff]
    %v365 = vld [vmem:[%s4 + $0xe8] sm:$0xff]
    %v366 = vld [vmem:[%s4 + $0xf0] sm:$0xff]
    %v367 = vld [vmem:[%s4 + $0xf8] sm:$0xff]
    %v368 = vld [vmem:[%s4 + $0x100] sm:$0xff]
    %v369 = vld [vmem:[%s4 + $0x108] sm:$0xff]
    %v370 = vld [vmem:[%s4 + $0x110] sm:$0xff]
    %v371 = vld [vmem:[%s4 + $0x118] sm:$0xff]
    %v372 = vld [vmem:[%s4 + $0x120] sm:$0xff]
    %v373 = vld [vmem:[%s4 + $0x128] sm:$0xff]
    %v374 = vld [vmem:[%s4 + $0x130] sm:$0xff]
    %v375 = vld [vmem:[%s4 + $0x138] sm:$0xff]
    %v376 = vld [vmem:[%s4 + $0x140] sm:$0xff]
    %v377 = vld [vmem:[%s4 + $0x148] sm:$0xff]
    %v378 = vld [vmem:[%s4 + $0x150] sm:$0xff]
    %v379 = vld [vmem:[%s4 + $0x158] sm:$0xff]
    %v380 = vld [vmem:[%s4 + $0x160] sm:$0xff]
    %v381 = vld [vmem:[%s4 + $0x168] sm:$0xff]
    %v382 = vld [vmem:[%s4 + $0x170] sm:$0xff]
    %v383 = vld [vmem:[%s4 + $0x178] sm:$0xff]
    %385 = vset.pattern.permute.xlu0 0
    %386 = vperm.xlu0 %385, %v336
    %v387 = vpop.permute.xlu0 %386
    %390 = vset.pattern.permute.xlu0 0
    %391 = vperm.xlu0 %390, %v337
    %v392 = vpop.permute.xlu0 %391
    %395 = vset.pattern.permute.xlu0 0
    %396 = vperm.xlu0 %395, %v338
    %v397 = vpop.permute.xlu0 %396
    %400 = vset.pattern.permute.xlu0 0
    %401 = vperm.xlu0 %400, %v339
    %v402 = vpop.permute.xlu0 %401
    %405 = vset.pattern.permute.xlu0 0
    %406 = vperm.xlu0 %405, %v340
    %v407 = vpop.permute.xlu0 %406
    %410 = vset.pattern.permute.xlu0 0
    %411 = vperm.xlu0 %410, %v341
    %v412 = vpop.permute.xlu0 %411
    %415 = vset.pattern.permute.xlu0 0
    %416 = vperm.xlu0 %415, %v342
    %v417 = vpop.permute.xlu0 %416
    %420 = vset.pattern.permute.xlu0 0
    %421 = vperm.xlu0 %420, %v343
    %v422 = vpop.permute.xlu0 %421
    %425 = vset.pattern.permute.xlu0 0
    %426 = vperm.xlu0 %425, %v344
    %v427 = vpop.permute.xlu0 %426
    %430 = vset.pattern.permute.xlu0 0
    %431 = vperm.xlu0 %430, %v345
    %v432 = vpop.permute.xlu0 %431
    %435 = vset.pattern.permute.xlu0 0
    %436 = vperm.xlu0 %435, %v346
    %v437 = vpop.permute.xlu0 %436
    %440 = vset.pattern.permute.xlu0 0
    %441 = vperm.xlu0 %440, %v347
    %v442 = vpop.permute.xlu0 %441
    %445 = vset.pattern.permute.xlu0 0
    %446 = vperm.xlu0 %445, %v348
    %v447 = vpop.permute.xlu0 %446
    %450 = vset.pattern.permute.xlu0 0
    %451 = vperm.xlu0 %450, %v349
    %v452 = vpop.permute.xlu0 %451
    %455 = vset.pattern.permute.xlu0 0
    %456 = vperm.xlu0 %455, %v350
    %v457 = vpop.permute.xlu0 %456
    %460 = vset.pattern.permute.xlu0 0
    %461 = vperm.xlu0 %460, %v351
    %v462 = vpop.permute.xlu0 %461
    %465 = vset.pattern.permute.xlu0 0
    %466 = vperm.xlu0 %465, %v352
    %v467 = vpop.permute.xlu0 %466
    %470 = vset.pattern.permute.xlu0 0
    %471 = vperm.xlu0 %470, %v353
    %v472 = vpop.permute.xlu0 %471
    %475 = vset.pattern.permute.xlu0 0
    %476 = vperm.xlu0 %475, %v354
    %v477 = vpop.permute.xlu0 %476
    %480 = vset.pattern.permute.xlu0 0
    %481 = vperm.xlu0 %480, %v355
    %v482 = vpop.permute.xlu0 %481
    %485 = vset.pattern.permute.xlu0 0
    %486 = vperm.xlu0 %485, %v356
    %v487 = vpop.permute.xlu0 %486
    %490 = vset.pattern.permute.xlu0 0
    %491 = vperm.xlu0 %490, %v357
    %v492 = vpop.permute.xlu0 %491
    %495 = vset.pattern.permute.xlu0 0
    %496 = vperm.xlu0 %495, %v358
    %v497 = vpop.permute.xlu0 %496
    %500 = vset.pattern.permute.xlu0 0
    %501 = vperm.xlu0 %500, %v359
    %v502 = vpop.permute.xlu0 %501
    %505 = vset.pattern.permute.xlu0 0
    %506 = vperm.xlu0 %505, %v360
    %v507 = vpop.permute.xlu0 %506
    %510 = vset.pattern.permute.xlu0 0
    %511 = vperm.xlu0 %510, %v361
    %v512 = vpop.permute.xlu0 %511
    %515 = vset.pattern.permute.xlu0 0
    %516 = vperm.xlu0 %515, %v362
    %v517 = vpop.permute.xlu0 %516
    %520 = vset.pattern.permute.xlu0 0
    %521 = vperm.xlu0 %520, %v363
    %v522 = vpop.permute.xlu0 %521
    %525 = vset.pattern.permute.xlu0 0
    %526 = vperm.xlu0 %525, %v364
    %v527 = vpop.permute.xlu0 %526
    %530 = vset.pattern.permute.xlu0 0
    %531 = vperm.xlu0 %530, %v365
    %v532 = vpop.permute.xlu0 %531
    %535 = vset.pattern.permute.xlu0 0
    %536 = vperm.xlu0 %535, %v366
    %v537 = vpop.permute.xlu0 %536
    %540 = vset.pattern.permute.xlu0 0
    %541 = vperm.xlu0 %540, %v367
    %v542 = vpop.permute.xlu0 %541
    %545 = vset.pattern.permute.xlu0 0
    %546 = vperm.xlu0 %545, %v368
    %v547 = vpop.permute.xlu0 %546
    %550 = vset.pattern.permute.xlu0 0
    %551 = vperm.xlu0 %550, %v369
    %v552 = vpop.permute.xlu0 %551
    %555 = vset.pattern.permute.xlu0 0
    %556 = vperm.xlu0 %555, %v370
    %v557 = vpop.permute.xlu0 %556
    %560 = vset.pattern.permute.xlu0 0
    %561 = vperm.xlu0 %560, %v371
    %v562 = vpop.permute.xlu0 %561
    %565 = vset.pattern.permute.xlu0 0
    %566 = vperm.xlu0 %565, %v372
    %v567 = vpop.permute.xlu0 %566
    %570 = vset.pattern.permute.xlu0 0
    %571 = vperm.xlu0 %570, %v373
    %v572 = vpop.permute.xlu0 %571
    %575 = vset.pattern.permute.xlu0 0
    %576 = vperm.xlu0 %575, %v374
    %v577 = vpop.permute.xlu0 %576
    %580 = vset.pattern.permute.xlu0 0
    %581 = vperm.xlu0 %580, %v375
    %v582 = vpop.permute.xlu0 %581
    %585 = vset.pattern.permute.xlu0 0
    %586 = vperm.xlu0 %585, %v376
    %v587 = vpop.permute.xlu0 %586
    %590 = vset.pattern.permute.xlu0 0
    %591 = vperm.xlu0 %590, %v377
    %v592 = vpop.permute.xlu0 %591
    %595 = vset.pattern.permute.xlu0 0
    %596 = vperm.xlu0 %595, %v378
    %v597 = vpop.permute.xlu0 %596
    %600 = vset.pattern.permute.xlu0 0
    %601 = vperm.xlu0 %600, %v379
    %v602 = vpop.permute.xlu0 %601
    %605 = vset.pattern.permute.xlu0 0
    %606 = vperm.xlu0 %605, %v380
    %v607 = vpop.permute.xlu0 %606
    %610 = vset.pattern.permute.xlu0 0
    %611 = vperm.xlu0 %610, %v381
    %v612 = vpop.permute.xlu0 %611
    %615 = vset.pattern.permute.xlu0 0
    %616 = vperm.xlu0 %615, %v382
    %v617 = vpop.permute.xlu0 %616
    %620 = vset.pattern.permute.xlu0 0
    %621 = vperm.xlu0 %620, %v383
    %v622 = vpop.permute.xlu0 %621
    %v672 = vunpack.c.l.b16 %v280
    %v673 = vunpack.c.l.b16 %v281
    %v674 = vunpack.c.l.b16 %v282
    %v675 = vunpack.c.l.b16 %v283
    %v676 = vunpack.c.l.b16 %v284
    %v677 = vunpack.c.l.b16 %v285
    %v678 = vunpack.c.l.b16 %v286
    %v679 = vunpack.c.l.b16 %v287
    %v680 = vunpack.c.l.b16 %v288
    %v681 = vunpack.c.l.b16 %v289
    %v682 = vunpack.c.l.b16 %v290
    %v683 = vunpack.c.l.b16 %v291
    %v684 = vunpack.c.l.b16 %v292
    %v685 = vunpack.c.l.b16 %v293
    %v686 = vunpack.c.l.b16 %v294
    %v687 = vunpack.c.l.b16 %v295
    %v688 = vunpack.c.l.b16 %v296
    %v689 = vunpack.c.l.b16 %v297
    %v690 = vunpack.c.l.b16 %v298
    %v691 = vunpack.c.l.b16 %v299
    %v692 = vunpack.c.l.b16 %v300
    %v693 = vunpack.c.l.b16 %v301
    %v694 = vunpack.c.l.b16 %v302
    %v695 = vunpack.c.l.b16 %v303
    %v696 = vunpack.c.l.b16 %v304
    %v697 = vunpack.c.l.b16 %v305
    %v698 = vunpack.c.l.b16 %v306
    %v699 = vunpack.c.l.b16 %v307
    %v700 = vunpack.c.l.b16 %v308
    %v701 = vunpack.c.l.b16 %v309
    %v702 = vunpack.c.l.b16 %v310
    %v703 = vunpack.c.l.b16 %v311
    %v704 = vunpack.c.l.b16 %v312
    %v705 = vunpack.c.l.b16 %v313
    %v706 = vunpack.c.l.b16 %v314
    %v707 = vunpack.c.l.b16 %v315
    %v708 = vunpack.c.l.b16 %v316
    %v709 = vunpack.c.l.b16 %v317
    %v710 = vunpack.c.l.b16 %v318
    %v711 = vunpack.c.l.b16 %v319
    %v712 = vunpack.c.l.b16 %v320
    %v713 = vunpack.c.l.b16 %v321
    %v714 = vunpack.c.l.b16 %v322
    %v715 = vunpack.c.l.b16 %v323
    %v716 = vunpack.c.l.b16 %v324
    %v717 = vunpack.c.l.b16 %v325
    %v718 = vunpack.c.l.b16 %v326
    %v719 = vunpack.c.l.b16 %v327
    %v720 = vpack.c.b16 %v673, %v672
    %v721 = vpack.c.b16 %v675, %v674
    %v722 = vpack.c.b16 %v677, %v676
    %v723 = vpack.c.b16 %v679, %v678
    %v724 = vpack.c.b16 %v681, %v680
    %v725 = vpack.c.b16 %v683, %v682
    %v726 = vpack.c.b16 %v685, %v684
    %v727 = vpack.c.b16 %v687, %v686
    %v728 = vpack.c.b16 %v689, %v688
    %v729 = vpack.c.b16 %v691, %v690
    %v730 = vpack.c.b16 %v693, %v692
    %v731 = vpack.c.b16 %v695, %v694
    %v732 = vpack.c.b16 %v697, %v696
    %v733 = vpack.c.b16 %v699, %v698
    %v734 = vpack.c.b16 %v701, %v700
    %v735 = vpack.c.b16 %v703, %v702
    %v736 = vpack.c.b16 %v705, %v704
    %v737 = vpack.c.b16 %v707, %v706
    %v738 = vpack.c.b16 %v709, %v708
    %v739 = vpack.c.b16 %v711, %v710
    %v740 = vpack.c.b16 %v713, %v712
    %v741 = vpack.c.b16 %v715, %v714
    %v742 = vpack.c.b16 %v717, %v716
    %v743 = vpack.c.b16 %v719, %v718
    %768 = vmatpush.bf16.msra.mxu0 %v335
    %769 = vmatpush.bf16.msra.mxu0 %v334
    %770 = vmatpush.bf16.msra.mxu0 %v333
    %771 = vmatpush.bf16.msra.mxu0 %v332
    %772 = vmatpush.bf16.msra.mxu0 %v331
    %773 = vmatpush.bf16.msra.mxu0 %v330
    %774 = vmatpush.bf16.msra.mxu0 %v329
    %775 = vmatpush.bf16.msra.mxu0 %v328
    %776 = vmatmul.bf16.gmra.mxu0 %v720
    %v777 = vpop.f32.mrf.mxu0
    %v778 = vadd.f32 %v387, %v777
    %v779 = vpop.f32.mrf.mxu0
    %v780 = vadd.f32 %v392, %v779
    %781 = vmatmul.bf16.gmra.mxu0 %v721
    %v782 = vpop.f32.mrf.mxu0
    %v783 = vadd.f32 %v397, %v782
    %v784 = vpop.f32.mrf.mxu0
    %v785 = vadd.f32 %v402, %v784
    %786 = vmatmul.bf16.gmra.mxu0 %v722
    %v787 = vpop.f32.mrf.mxu0
    %v788 = vadd.f32 %v407, %v787
    %v789 = vpop.f32.mrf.mxu0
    %v790 = vadd.f32 %v412, %v789
    %791 = vmatmul.bf16.gmra.mxu0 %v723
    %v792 = vpop.f32.mrf.mxu0
    %v793 = vadd.f32 %v417, %v792
    %v794 = vpop.f32.mrf.mxu0
    %v795 = vadd.f32 %v422, %v794
    %796 = vmatmul.bf16.gmra.mxu0 %v724
    %v797 = vpop.f32.mrf.mxu0
    %v798 = vadd.f32 %v427, %v797
    %v799 = vpop.f32.mrf.mxu0
    %v800 = vadd.f32 %v432, %v799
    %801 = vmatmul.bf16.gmra.mxu0 %v725
    %v802 = vpop.f32.mrf.mxu0
    %v803 = vadd.f32 %v437, %v802
    %v804 = vpop.f32.mrf.mxu0
    %v805 = vadd.f32 %v442, %v804
    %806 = vmatmul.bf16.gmra.mxu0 %v726
    %v807 = vpop.f32.mrf.mxu0
    %v808 = vadd.f32 %v447, %v807
    %v809 = vpop.f32.mrf.mxu0
    %v810 = vadd.f32 %v452, %v809
    %811 = vmatmul.bf16.gmra.mxu0 %v727
    %v812 = vpop.f32.mrf.mxu0
    %v813 = vadd.f32 %v457, %v812
    %v814 = vpop.f32.mrf.mxu0
    %v815 = vadd.f32 %v462, %v814
    %816 = vmatmul.bf16.gmra.mxu0 %v728
    %v817 = vpop.f32.mrf.mxu0
    %v818 = vadd.f32 %v467, %v817
    %v819 = vpop.f32.mrf.mxu0
    %v820 = vadd.f32 %v472, %v819
    %821 = vmatmul.bf16.gmra.mxu0 %v729
    %v822 = vpop.f32.mrf.mxu0
    %v823 = vadd.f32 %v477, %v822
    %v824 = vpop.f32.mrf.mxu0
    %v825 = vadd.f32 %v482, %v824
    %826 = vmatmul.bf16.gmra.mxu0 %v730
    %v827 = vpop.f32.mrf.mxu0
    %v828 = vadd.f32 %v487, %v827
    %v829 = vpop.f32.mrf.mxu0
    %v830 = vadd.f32 %v492, %v829
    %831 = vmatmul.bf16.gmra.mxu0 %v731
    %v832 = vpop.f32.mrf.mxu0
    %v833 = vadd.f32 %v497, %v832
    %v834 = vpop.f32.mrf.mxu0
    %v835 = vadd.f32 %v502, %v834
    %836 = vmatmul.bf16.gmra.mxu0 %v732
    %v837 = vpop.f32.mrf.mxu0
    %v838 = vadd.f32 %v507, %v837
    %v839 = vpop.f32.mrf.mxu0
    %v840 = vadd.f32 %v512, %v839
    %841 = vmatmul.bf16.gmra.mxu0 %v733
    %v842 = vpop.f32.mrf.mxu0
    %v843 = vadd.f32 %v517, %v842
    %v844 = vpop.f32.mrf.mxu0
    %v845 = vadd.f32 %v522, %v844
    %846 = vmatmul.bf16.gmra.mxu0 %v734
    %v847 = vpop.f32.mrf.mxu0
    %v848 = vadd.f32 %v527, %v847
    %v849 = vpop.f32.mrf.mxu0
    %v850 = vadd.f32 %v532, %v849
    %851 = vmatmul.bf16.gmra.mxu0 %v735
    %v852 = vpop.f32.mrf.mxu0
    %v853 = vadd.f32 %v537, %v852
    %v854 = vpop.f32.mrf.mxu0
    %v855 = vadd.f32 %v542, %v854
    %856 = vmatmul.bf16.gmra.mxu0 %v736
    %v857 = vpop.f32.mrf.mxu0
    %v858 = vadd.f32 %v547, %v857
    %v859 = vpop.f32.mrf.mxu0
    %v860 = vadd.f32 %v552, %v859
    %861 = vmatmul.bf16.gmra.mxu0 %v737
    %v862 = vpop.f32.mrf.mxu0
    %v863 = vadd.f32 %v557, %v862
    %v864 = vpop.f32.mrf.mxu0
    %v865 = vadd.f32 %v562, %v864
    %866 = vmatmul.bf16.gmra.mxu0 %v738
    %v867 = vpop.f32.mrf.mxu0
    %v868 = vadd.f32 %v567, %v867
    %v869 = vpop.f32.mrf.mxu0
    %v870 = vadd.f32 %v572, %v869
    %871 = vmatmul.bf16.gmra.mxu0 %v739
    %v872 = vpop.f32.mrf.mxu0
    %v873 = vadd.f32 %v577, %v872
    %v874 = vpop.f32.mrf.mxu0
    %v875 = vadd.f32 %v582, %v874
    %876 = vmatmul.bf16.gmra.mxu0 %v740
    %v877 = vpop.f32.mrf.mxu0
    %v878 = vadd.f32 %v587, %v877
    %v879 = vpop.f32.mrf.mxu0
    %v880 = vadd.f32 %v592, %v879
    %881 = vmatmul.bf16.gmra.mxu0 %v741
    %v882 = vpop.f32.mrf.mxu0
    %v883 = vadd.f32 %v597, %v882
    %v884 = vpop.f32.mrf.mxu0
    %v885 = vadd.f32 %v602, %v884
    %886 = vmatmul.bf16.gmra.mxu0 %v742
    %v887 = vpop.f32.mrf.mxu0
    %v888 = vadd.f32 %v607, %v887
    %v889 = vpop.f32.mrf.mxu0
    %v890 = vadd.f32 %v612, %v889
    %891 = vmatmul.bf16.gmra.mxu0 %v743
    %v892 = vpop.f32.mrf.mxu0
    %v893 = vadd.f32 %v617, %v892
    %v894 = vpop.f32.mrf.mxu0
    %v895 = vadd.f32 %v622, %v894
    %896 = vdwg.mxu0
    %v897 = vmax.f32 %v778, 0.0
    %v898 = vmax.f32 %v780, 0.0
    %v899 = vmax.f32 %v783, 0.0
    %v900 = vmax.f32 %v785, 0.0
    %v901 = vmax.f32 %v788, 0.0
    %v902 = vmax.f32 %v790, 0.0
    %v903 = vmax.f32 %v793, 0.0
    %v904 = vmax.f32 %v795, 0.0
    %v905 = vmax.f32 %v798, 0.0
    %v906 = vmax.f32 %v800, 0.0
    %v907 = vmax.f32 %v803, 0.0
    %v908 = vmax.f32 %v805, 0.0
    %v909 = vmax.f32 %v808, 0.0
    %v910 = vmax.f32 %v810, 0.0
    %v911 = vmax.f32 %v813, 0.0
    %v912 = vmax.f32 %v815, 0.0
    %v913 = vmax.f32 %v818, 0.0
    %v914 = vmax.f32 %v820, 0.0
    %v915 = vmax.f32 %v823, 0.0
    %v916 = vmax.f32 %v825, 0.0
    %v917 = vmax.f32 %v828, 0.0
    %v918 = vmax.f32 %v830, 0.0
    %v919 = vmax.f32 %v833, 0.0
    %v920 = vmax.f32 %v835, 0.0
    %v921 = vmax.f32 %v838, 0.0
    %v922 = vmax.f32 %v840, 0.0
    %v923 = vmax.f32 %v843, 0.0
    %v924 = vmax.f32 %v845, 0.0
    %v925 = vmax.f32 %v848, 0.0
    %v926 = vmax.f32 %v850, 0.0
    %v927 = vmax.f32 %v853, 0.0
    %v928 = vmax.f32 %v855, 0.0
    %v929 = vmax.f32 %v858, 0.0
    %v930 = vmax.f32 %v860, 0.0
    %v931 = vmax.f32 %v863, 0.0
    %v932 = vmax.f32 %v865, 0.0
    %v933 = vmax.f32 %v868, 0.0
    %v934 = vmax.f32 %v870, 0.0
    %v935 = vmax.f32 %v873, 0.0
    %v936 = vmax.f32 %v875, 0.0
    %v937 = vmax.f32 %v878, 0.0
    %v938 = vmax.f32 %v880, 0.0
    %v939 = vmax.f32 %v883, 0.0
    %v940 = vmax.f32 %v885, 0.0
    %v941 = vmax.f32 %v888, 0.0
    %v942 = vmax.f32 %v890, 0.0
    %v943 = vmax.f32 %v893, 0.0
    %v944 = vmax.f32 %v895, 0.0
    %v945 = vld [vmem:[%s5] sm:$0xff]
    %v946 = vld [vmem:[%s5 + $0x8] sm:$0xff]
    %v947 = vld [vmem:[%s5 + $0x10] sm:$0xff]
    %v948 = vld [vmem:[%s5 + $0x18] sm:$0xff]
    %v949 = vld [vmem:[%s5 + $0x20] sm:$0xff]
    %v950 = vld [vmem:[%s5 + $0x28] sm:$0xff]
    %v951 = vld [vmem:[%s5 + $0x30] sm:$0xff]
    %v952 = vld [vmem:[%s5 + $0x38] sm:$0xff]
    %v953 = vld [vmem:[%s5 + $0x40] sm:$0xff]
    %v954 = vld [vmem:[%s5 + $0x48] sm:$0xff]
    %v955 = vld [vmem:[%s5 + $0x50] sm:$0xff]
    %v956 = vld [vmem:[%s5 + $0x58] sm:$0xff]
    %v957 = vld [vmem:[%s5 + $0x60] sm:$0xff]
    %v958 = vld [vmem:[%s5 + $0x68] sm:$0xff]
    %v959 = vld [vmem:[%s5 + $0x70] sm:$0xff]
    %v960 = vld [vmem:[%s5 + $0x78] sm:$0xff]
    %v961 = vld [vmem:[%s5 + $0x80] sm:$0xff]
    %v962 = vld [vmem:[%s5 + $0x88] sm:$0xff]
    %v963 = vld [vmem:[%s5 + $0x90] sm:$0xff]
    %v964 = vld [vmem:[%s5 + $0x98] sm:$0xff]
    %v965 = vld [vmem:[%s5 + $0xa0] sm:$0xff]
    %v966 = vld [vmem:[%s5 + $0xa8] sm:$0xff]
    %v967 = vld [vmem:[%s5 + $0xb0] sm:$0xff]
    %v968 = vld [vmem:[%s5 + $0xb8] sm:$0xff]
    %v969 = vld [vmem:[%s5 + $0xc0] sm:$0xff]
    %v970 = vld [vmem:[%s5 + $0xc8] sm:$0xff]
    %v971 = vld [vmem:[%s5 + $0xd0] sm:$0xff]
    %v972 = vld [vmem:[%s5 + $0xd8] sm:$0xff]
    %v973 = vld [vmem:[%s5 + $0xe0] sm:$0xff]
    %v974 = vld [vmem:[%s5 + $0xe8] sm:$0xff]
    %v975 = vld [vmem:[%s5 + $0xf0] sm:$0xff]
    %v976 = vld [vmem:[%s5 + $0xf8] sm:$0xff]
    %v977 = vld [vmem:[%s5 + $0x100] sm:$0xff]
    %v978 = vld [vmem:[%s5 + $0x108] sm:$0xff]
    %v979 = vld [vmem:[%s5 + $0x110] sm:$0xff]
    %v980 = vld [vmem:[%s5 + $0x118] sm:$0xff]
    %v981 = vld [vmem:[%s5 + $0x120] sm:$0xff]
    %v982 = vld [vmem:[%s5 + $0x128] sm:$0xff]
    %v983 = vld [vmem:[%s5 + $0x130] sm:$0xff]
    %v984 = vld [vmem:[%s5 + $0x138] sm:$0xff]
    %v985 = vld [vmem:[%s5 + $0x140] sm:$0xff]
    %v986 = vld [vmem:[%s5 + $0x148] sm:$0xff]
    %v987 = vld [vmem:[%s5 + $0x150] sm:$0xff]
    %v988 = vld [vmem:[%s5 + $0x158] sm:$0xff]
    %v989 = vld [vmem:[%s5 + $0x160] sm:$0xff]
    %v990 = vld [vmem:[%s5 + $0x168] sm:$0xff]
    %v991 = vld [vmem:[%s5 + $0x170] sm:$0xff]
    %v992 = vld [vmem:[%s5 + $0x178] sm:$0xff]
    %994 = vset.pattern.permute.xlu0 0
    %995 = vperm.xlu0 %994, %v945
    %v996 = vpop.permute.xlu0 %995
    %999 = vset.pattern.permute.xlu0 0
    %1000 = vperm.xlu0 %999, %v946
    %v1001 = vpop.permute.xlu0 %1000
    %1004 = vset.pattern.permute.xlu0 0
    %1005 = vperm.xlu0 %1004, %v947
    %v1006 = vpop.permute.xlu0 %1005
    %1009 = vset.pattern.permute.xlu0 0
    %1010 = vperm.xlu0 %1009, %v948
    %v1011 = vpop.permute.xlu0 %1010
    %1014 = vset.pattern.permute.xlu0 0
    %1015 = vperm.xlu0 %1014, %v949
    %v1016 = vpop.permute.xlu0 %1015
    %1019 = vset.pattern.permute.xlu0 0
    %1020 = vperm.xlu0 %1019, %v950
    %v1021 = vpop.permute.xlu0 %1020
    %1024 = vset.pattern.permute.xlu0 0
    %1025 = vperm.xlu0 %1024, %v951
    %v1026 = vpop.permute.xlu0 %1025
    %1029 = vset.pattern.permute.xlu0 0
    %1030 = vperm.xlu0 %1029, %v952
    %v1031 = vpop.permute.xlu0 %1030
    %1034 = vset.pattern.permute.xlu0 0
    %1035 = vperm.xlu0 %1034, %v953
    %v1036 = vpop.permute.xlu0 %1035
    %1039 = vset.pattern.permute.xlu0 0
    %1040 = vperm.xlu0 %1039, %v954
    %v1041 = vpop.permute.xlu0 %1040
    %1044 = vset.pattern.permute.xlu0 0
    %1045 = vperm.xlu0 %1044, %v955
    %v1046 = vpop.permute.xlu0 %1045
    %1049 = vset.pattern.permute.xlu0 0
    %1050 = vperm.xlu0 %1049, %v956
    %v1051 = vpop.permute.xlu0 %1050
    %1054 = vset.pattern.permute.xlu0 0
    %1055 = vperm.xlu0 %1054, %v957
    %v1056 = vpop.permute.xlu0 %1055
    %1059 = vset.pattern.permute.xlu0 0
    %1060 = vperm.xlu0 %1059, %v958
    %v1061 = vpop.permute.xlu0 %1060
    %1064 = vset.pattern.permute.xlu0 0
    %1065 = vperm.xlu0 %1064, %v959
    %v1066 = vpop.permute.xlu0 %1065
    %1069 = vset.pattern.permute.xlu0 0
    %1070 = vperm.xlu0 %1069, %v960
    %v1071 = vpop.permute.xlu0 %1070
    %1074 = vset.pattern.permute.xlu0 0
    %1075 = vperm.xlu0 %1074, %v961
    %v1076 = vpop.permute.xlu0 %1075
    %1079 = vset.pattern.permute.xlu0 0
    %1080 = vperm.xlu0 %1079, %v962
    %v1081 = vpop.permute.xlu0 %1080
    %1084 = vset.pattern.permute.xlu0 0
    %1085 = vperm.xlu0 %1084, %v963
    %v1086 = vpop.permute.xlu0 %1085
    %1089 = vset.pattern.permute.xlu0 0
    %1090 = vperm.xlu0 %1089, %v964
    %v1091 = vpop.permute.xlu0 %1090
    %1094 = vset.pattern.permute.xlu0 0
    %1095 = vperm.xlu0 %1094, %v965
    %v1096 = vpop.permute.xlu0 %1095
    %1099 = vset.pattern.permute.xlu0 0
    %1100 = vperm.xlu0 %1099, %v966
    %v1101 = vpop.permute.xlu0 %1100
    %1104 = vset.pattern.permute.xlu0 0
    %1105 = vperm.xlu0 %1104, %v967
    %v1106 = vpop.permute.xlu0 %1105
    %1109 = vset.pattern.permute.xlu0 0
    %1110 = vperm.xlu0 %1109, %v968
    %v1111 = vpop.permute.xlu0 %1110
    %1114 = vset.pattern.permute.xlu0 0
    %1115 = vperm.xlu0 %1114, %v969
    %v1116 = vpop.permute.xlu0 %1115
    %1119 = vset.pattern.permute.xlu0 0
    %1120 = vperm.xlu0 %1119, %v970
    %v1121 = vpop.permute.xlu0 %1120
    %1124 = vset.pattern.permute.xlu0 0
    %1125 = vperm.xlu0 %1124, %v971
    %v1126 = vpop.permute.xlu0 %1125
    %1129 = vset.pattern.permute.xlu0 0
    %1130 = vperm.xlu0 %1129, %v972
    %v1131 = vpop.permute.xlu0 %1130
    %1134 = vset.pattern.permute.xlu0 0
    %1135 = vperm.xlu0 %1134, %v973
    %v1136 = vpop.permute.xlu0 %1135
    %1139 = vset.pattern.permute.xlu0 0
    %1140 = vperm.xlu0 %1139, %v974
    %v1141 = vpop.permute.xlu0 %1140
    %1144 = vset.pattern.permute.xlu0 0
    %1145 = vperm.xlu0 %1144, %v975
    %v1146 = vpop.permute.xlu0 %1145
    %1149 = vset.pattern.permute.xlu0 0
    %1150 = vperm.xlu0 %1149, %v976
    %v1151 = vpop.permute.xlu0 %1150
    %1154 = vset.pattern.permute.xlu0 0
    %1155 = vperm.xlu0 %1154, %v977
    %v1156 = vpop.permute.xlu0 %1155
    %1159 = vset.pattern.permute.xlu0 0
    %1160 = vperm.xlu0 %1159, %v978
    %v1161 = vpop.permute.xlu0 %1160
    %1164 = vset.pattern.permute.xlu0 0
    %1165 = vperm.xlu0 %1164, %v979
    %v1166 = vpop.permute.xlu0 %1165
    %1169 = vset.pattern.permute.xlu0 0
    %1170 = vperm.xlu0 %1169, %v980
    %v1171 = vpop.permute.xlu0 %1170
    %1174 = vset.pattern.permute.xlu0 0
    %1175 = vperm.xlu0 %1174, %v981
    %v1176 = vpop.permute.xlu0 %1175
    %1179 = vset.pattern.permute.xlu0 0
    %1180 = vperm.xlu0 %1179, %v982
    %v1181 = vpop.permute.xlu0 %1180
    %1184 = vset.pattern.permute.xlu0 0
    %1185 = vperm.xlu0 %1184, %v983
    %v1186 = vpop.permute.xlu0 %1185
    %1189 = vset.pattern.permute.xlu0 0
    %1190 = vperm.xlu0 %1189, %v984
    %v1191 = vpop.permute.xlu0 %1190
    %1194 = vset.pattern.permute.xlu0 0
    %1195 = vperm.xlu0 %1194, %v985
    %v1196 = vpop.permute.xlu0 %1195
    %1199 = vset.pattern.permute.xlu0 0
    %1200 = vperm.xlu0 %1199, %v986
    %v1201 = vpop.permute.xlu0 %1200
    %1204 = vset.pattern.permute.xlu0 0
    %1205 = vperm.xlu0 %1204, %v987
    %v1206 = vpop.permute.xlu0 %1205
    %1209 = vset.pattern.permute.xlu0 0
    %1210 = vperm.xlu0 %1209, %v988
    %v1211 = vpop.permute.xlu0 %1210
    %1214 = vset.pattern.permute.xlu0 0
    %1215 = vperm.xlu0 %1214, %v989
    %v1216 = vpop.permute.xlu0 %1215
    %1219 = vset.pattern.permute.xlu0 0
    %1220 = vperm.xlu0 %1219, %v990
    %v1221 = vpop.permute.xlu0 %1220
    %1224 = vset.pattern.permute.xlu0 0
    %1225 = vperm.xlu0 %1224, %v991
    %v1226 = vpop.permute.xlu0 %1225
    %1229 = vset.pattern.permute.xlu0 0
    %1230 = vperm.xlu0 %1229, %v992
    %v1231 = vpop.permute.xlu0 %1230
    %v1233 = vmul.f32 %v897, %v996
    %v1234 = vmul.f32 %v898, %v1001
    %v1235 = vmul.f32 %v899, %v1006
    %v1236 = vmul.f32 %v900, %v1011
    %v1237 = vmul.f32 %v901, %v1016
    %v1238 = vmul.f32 %v902, %v1021
    %v1239 = vmul.f32 %v903, %v1026
    %v1240 = vmul.f32 %v904, %v1031
    %v1241 = vmul.f32 %v905, %v1036
    %v1242 = vmul.f32 %v906, %v1041
    %v1243 = vmul.f32 %v907, %v1046
    %v1244 = vmul.f32 %v908, %v1051
    %v1245 = vmul.f32 %v909, %v1056
    %v1246 = vmul.f32 %v910, %v1061
    %v1247 = vmul.f32 %v911, %v1066
    %v1248 = vmul.f32 %v912, %v1071
    %v1249 = vmul.f32 %v913, %v1076
    %v1250 = vmul.f32 %v914, %v1081
    %v1251 = vmul.f32 %v915, %v1086
    %v1252 = vmul.f32 %v916, %v1091
    %v1253 = vmul.f32 %v917, %v1096
    %v1254 = vmul.f32 %v918, %v1101
    %v1255 = vmul.f32 %v919, %v1106
    %v1256 = vmul.f32 %v920, %v1111
    %v1257 = vmul.f32 %v921, %v1116
    %v1258 = vmul.f32 %v922, %v1121
    %v1259 = vmul.f32 %v923, %v1126
    %v1260 = vmul.f32 %v924, %v1131
    %v1261 = vmul.f32 %v925, %v1136
    %v1262 = vmul.f32 %v926, %v1141
    %v1263 = vmul.f32 %v927, %v1146
    %v1264 = vmul.f32 %v928, %v1151
    %v1265 = vmul.f32 %v929, %v1156
    %v1266 = vmul.f32 %v930, %v1161
    %v1267 = vmul.f32 %v931, %v1166
    %v1268 = vmul.f32 %v932, %v1171
    %v1269 = vmul.f32 %v933, %v1176
    %v1270 = vmul.f32 %v934, %v1181
    %v1271 = vmul.f32 %v935, %v1186
    %v1272 = vmul.f32 %v936, %v1191
    %v1273 = vmul.f32 %v937, %v1196
    %v1274 = vmul.f32 %v938, %v1201
    %v1275 = vmul.f32 %v939, %v1206
    %v1276 = vmul.f32 %v940, %v1211
    %v1277 = vmul.f32 %v941, %v1216
    %v1278 = vmul.f32 %v942, %v1221
    %v1279 = vmul.f32 %v943, %v1226
    %v1280 = vmul.f32 %v944, %v1231
    %v1281 = vadd.f32 %v1233, %v1234
    %v1282 = vadd.f32 %v1281, %v1235
    %v1283 = vadd.f32 %v1282, %v1236
    %v1284 = vadd.f32 %v1283, %v1237
    %v1285 = vadd.f32 %v1284, %v1238
    %v1286 = vadd.f32 %v1285, %v1239
    %v1287 = vadd.f32 %v1286, %v1240
    %v1288 = vadd.f32 %v1287, %v1241
    %v1289 = vadd.f32 %v1288, %v1242
    %v1290 = vadd.f32 %v1289, %v1243
    %v1291 = vadd.f32 %v1290, %v1244
    %v1292 = vadd.f32 %v1291, %v1245
    %v1293 = vadd.f32 %v1292, %v1246
    %v1294 = vadd.f32 %v1293, %v1247
    %v1295 = vadd.f32 %v1294, %v1248
    %v1296 = vadd.f32 %v1295, %v1249
    %v1297 = vadd.f32 %v1296, %v1250
    %v1298 = vadd.f32 %v1297, %v1251
    %v1299 = vadd.f32 %v1298, %v1252
    %v1300 = vadd.f32 %v1299, %v1253
    %v1301 = vadd.f32 %v1300, %v1254
    %v1302 = vadd.f32 %v1301, %v1255
    %v1303 = vadd.f32 %v1302, %v1256
    %v1304 = vadd.f32 %v1303, %v1257
    %v1305 = vadd.f32 %v1304, %v1258
    %v1306 = vadd.f32 %v1305, %v1259
    %v1307 = vadd.f32 %v1306, %v1260
    %v1308 = vadd.f32 %v1307, %v1261
    %v1309 = vadd.f32 %v1308, %v1262
    %v1310 = vadd.f32 %v1309, %v1263
    %v1311 = vadd.f32 %v1310, %v1264
    %v1312 = vadd.f32 %v1311, %v1265
    %v1313 = vadd.f32 %v1312, %v1266
    %v1314 = vadd.f32 %v1313, %v1267
    %v1315 = vadd.f32 %v1314, %v1268
    %v1316 = vadd.f32 %v1315, %v1269
    %v1317 = vadd.f32 %v1316, %v1270
    %v1318 = vadd.f32 %v1317, %v1271
    %v1319 = vadd.f32 %v1318, %v1272
    %v1320 = vadd.f32 %v1319, %v1273
    %v1321 = vadd.f32 %v1320, %v1274
    %v1322 = vadd.f32 %v1321, %v1275
    %v1323 = vadd.f32 %v1322, %v1276
    %v1324 = vadd.f32 %v1323, %v1277
    %v1325 = vadd.f32 %v1324, %v1278
    %v1326 = vadd.f32 %v1325, %v1279
    %v1327 = vadd.f32 %v1326, %v1280
    %v1328 = vrot.slane %v1327, 4
    %v1329 = vadd.f32 %v1327, %v1328
    %v1330 = vrot.slane %v1329, 2
    %v1331 = vadd.f32 %v1329, %v1330
    %v1332 = vrot.slane %v1331, 1
    %v1333 = vadd.f32 %v1331, %v1332
    %v1334 = vld [vmem:[#allocation2] sm:$0x1]
    %1336 = vset.pattern.permute.xlu0 0
    %1337 = vperm.xlu0 %1336, %v1334
    %v1338 = vpop.permute.xlu0 %1337
    %v1340 = vperm.slane %v1338, 0
    %v1341 = vadd.f32 %v1333, %v1340
    %1342 = vst [vmem:[#allocation3] sm:$0x1] %v1341
    // Predicated region
    $region30: #{tpu_custom_call.1} parent=1 // pred_check
      _
    $region31: #{tpu_custom_call.1} parent=1 // pred_check_branch
      %1344 = sbr.rel (0) target = $region33
    $region32: #{tpu_custom_call.1} parent=1 // pred_region
      %1346 = vsyncadd [#allocation4], 0
      %s1348 = sshll.u32 [#allocation3], 4
      %s1349 = int_to_ptr.vmem [resolvable:$true] %s1348
      %s1350 = sshll.u32 %s7, 4
      %s1351 = int_to_ptr.hbm [resolvable:$true] %s1350
      %1353 = dma.vmem_to_hbm [thread:$0]  %s1349, 16, %s1351, [#allocation4]
    $region33: #{tpu_custom_call.1} parent=1 // pred_fallthru
      _
    // Predicated region
    $region34: #{tpu_custom_call.1} parent=1 // pred_check
      _
    $region35: #{tpu_custom_call.1} parent=1 // pred_check_branch
      %1355 = sbr.rel (0) target = $region37
    $region36: #{tpu_custom_call.1} parent=1 // pred_region
      %1357 = dma.done [#allocation4], 16
    $region37: #{tpu_custom_call.1} parent=1 // pred_fallthru
      _
    %1358 = vsyncpa [#allocation4], 1

</llo_original>
